<compile_context>
chip_gen: v5e
topology: v5e:2x2
jax: 0.10.0
libtpu: 0.0.40
codegen_flags: <defaults>
</compile_context>

<pallas_src>
import jax
import jax.numpy as jnp
from jax.experimental import pallas as pl
from jax.experimental.pallas import tpu as pltpu

_LANE_COLS = 1024            # lane-dense last dim (multiple of 128)
_DEFAULT_BLOCK_ROWS = 512    # 512 x 1024 x 4 B = 2 MiB per f32 buffer


def _cdiv(a, b):
    return -(-a // b)


def _fermi_dirac_kernel(params_ref, dist_ref, out_ref):
    # params_ref: SMEM f32[2] = [r, t]
    r = params_ref[0]
    inv_t = 1.0 / params_ref[1]
    d = dist_ref[...].astype(jnp.float32)            # compute in f32 (v5e has no bf16 VPU/EUP)
    probs = jax.nn.sigmoid((r - d) * inv_t)          # == 1 / (exp((d - r)/t) + 1)
    out_ref[...] = probs.astype(out_ref.dtype)       # store in native dtype


def fermi_dirac_decoder(dist, r, t, *, block_rows=_DEFAULT_BLOCK_ROWS):
    """Elementwise Fermi-Dirac decoder via a Pallas TPU kernel.

    dist: any-shaped array (f32 / bf16 / ...). Returns same shape & dtype.
    r, t: scalars (Python numbers or traced scalars) -> passed via SMEM scalar prefetch.
    """
    orig_shape = dist.shape
    orig_dtype = dist.dtype

    flat = dist.reshape(-1)
    n = flat.shape[0]
    cols = _LANE_COLS
    rows = max(1, _cdiv(n, cols))

    if rows < 16:
        # Tiny input: single tile; block rows == full rows satisfies the (8,128) rule.
        tile_rows = rows
    else:
        # >= 2 tiles so both v7x TensorCores get work; ~block_rows rows per tile,
        # rounded up to a multiple of 8 (sublane granularity), minimal padding waste.
        num_tiles = max(2, _cdiv(rows, block_rows))
        tile_rows = _cdiv(_cdiv(rows, num_tiles), 8) * 8

    grid_n = _cdiv(rows, tile_rows)
    padded_rows = grid_n * tile_rows
    padded_n = padded_rows * cols

    if padded_n != n:
        flat = jnp.pad(flat, (0, padded_n - n))
    x2 = flat.reshape(padded_rows, cols)

    params = jnp.asarray([r, t], dtype=jnp.float32)

    out2 = pl.pallas_call(
        _fermi_dirac_kernel,
        out_shape=jax.ShapeDtypeStruct((padded_rows, cols), orig_dtype),
        grid_spec=pltpu.PrefetchScalarGridSpec(
            num_scalar_prefetch=1,
            grid=(grid_n,),
            in_specs=[pl.BlockSpec((tile_rows, cols), lambda i, params: (i, 0))],
            out_specs=pl.BlockSpec((tile_rows, cols), lambda i, params: (i, 0)),
        ),
        compiler_params=pltpu.CompilerParams(
            dimension_semantics=("parallel",),
            vmem_limit_bytes=32 * 1024 * 1024,
        ),
    )(params, x2)

    return out2.reshape(-1)[:n].reshape(orig_shape)


if __name__ == "__main__":
    # Module "parameters" (plain scalars in the PyTorch __init__).
    r = 2.0
    t = 1.0

    key = jax.random.PRNGKey(0)
    k1, k2 = jax.random.split(key)

    # (8, 128) f32 pairwise-distance-like matrix.
    dist = jax.random.uniform(k1, (8, 128), dtype=jnp.float32) * 5.0
    probs = jax.block_until_ready(fermi_dirac_decoder(dist, r, t))
    ref = 1.0 / (jnp.exp((dist - r) / t) + 1.0)
    assert probs.shape == dist.shape and probs.dtype == dist.dtype
    assert jnp.max(jnp.abs(probs - ref)) < 1e-5

    # Odd shape + bf16 I/O: exercises padding and in-kernel dtype handling.
    dist_bf16 = (jax.random.uniform(k2, (7, 33), dtype=jnp.float32) * 5.0).astype(jnp.bfloat16)
    probs_bf16 = jax.block_until_ready(fermi_dirac_decoder(dist_bf16, r, t))
    ref_bf16 = 1.0 / (jnp.exp((dist_bf16.astype(jnp.float32) - r) / t) + 1.0)
    assert probs_bf16.shape == dist_bf16.shape and probs_bf16.dtype == jnp.bfloat16
    assert jnp.max(jnp.abs(probs_bf16.astype(jnp.float32) - ref_bf16)) < 1e-2

    print("KERNEL_OK")
</pallas_src>

<mosaic_0001>
module attributes {stable_mosaic.version = 11 : i64} {
  func.func @_fermi_dirac_kernel(%arg0: i32, %arg1: memref<2xf32, #tpu.memory_space<smem>>, %arg2: memref<1x1024xf32, #tpu.memory_space<vmem>>, %arg3: memref<1x1024xf32, #tpu.memory_space<vmem>>) attributes {dimension_semantics = [#tpu.dimension_semantics<parallel>], iteration_bounds = array<i64: 1>, scalar_prefetch = 1 : i64, scratch_operands = 0 : i64, tpu.core_type = #tpu.core_type<tc>, window_params = [{transform_indices = @transform_0, window_bounds = array<i64: 1, 1024>}, {transform_indices = @transform_1, window_bounds = array<i64: 1, 1024>}]} {
    %c0 = arith.constant 0 : index
    %0 = memref.load %arg1[%c0] : memref<2xf32, #tpu.memory_space<smem>>
    %c1 = arith.constant 1 : index
    %1 = memref.load %arg1[%c1] : memref<2xf32, #tpu.memory_space<smem>>
    %cst = arith.constant 1.000000e+00 : f32
    %2 = arith.divf %cst, %1 : f32
    %c0_0 = arith.constant 0 : index
    %c0_1 = arith.constant 0 : index
    %3 = vector.load %arg2[%c0_0, %c0_1] : memref<1x1024xf32, #tpu.memory_space<vmem>>, vector<1x1024xf32>
    %4 = vector.broadcast %0 : f32 to vector<1x1024xf32>
    %5 = arith.subf %4, %3 : vector<1x1024xf32>
    %6 = vector.broadcast %2 : f32 to vector<1x1024xf32>
    %7 = arith.mulf %5, %6 : vector<1x1024xf32>
    %8 = arith.negf %7 : vector<1x1024xf32>
    %9 = math.exp %8 : vector<1x1024xf32>
    %cst_2 = arith.constant 1.000000e+00 : f32
    %10 = vector.broadcast %cst_2 : f32 to vector<1x1024xf32>
    %11 = arith.addf %10, %9 : vector<1x1024xf32>
    %12 = arith.divf %10, %11 : vector<1x1024xf32>
    %c0_3 = arith.constant 0 : index
    %c0_4 = arith.constant 0 : index
    %13 = vector.load %arg3[%c0_3, %c0_4] : memref<1x1024xf32, #tpu.memory_space<vmem>>, vector<1x1024xf32>
    tpu.vector_store %arg3[%c0_3, %c0_4], %12 {strides = array<i32>} : memref<1x1024xf32, #tpu.memory_space<vmem>>, vector<1x1024xf32>,
    return
  }
  func.func @transform_0(%arg0: i32, %arg1: memref<2xf32, #tpu.memory_space<smem>>) -> (i32, i32) {
    %c0_i32 = arith.constant 0 : i32
    %c0_i32_0 = arith.constant 0 : i32
    return %arg0, %c0_i32 : i32, i32
  }
  func.func @transform_1(%arg0: i32, %arg1: memref<2xf32, #tpu.memory_space<smem>>) -> (i32, i32) {
    %c0_i32 = arith.constant 0 : i32
    %c0_i32_0 = arith.constant 0 : i32
    return %arg0, %c0_i32 : i32, i32
  }
}

</mosaic_0001>

<llo_original>
// kernel: tpu_custom_call.1
$region0: #{tpu_custom_call.1}
  #allocation0 [shape = 'u32[]', space=smem, size = 0x4, offset = 0x4, fixed_abs, tag = 'smem constant byte address 0x4 - core index']
  #allocation1 [shape = 'u32[72,128]{1,0:T(1,128)}', space=vmem, size = 0x9000, scoped, tag = 'internal scratch']
  #allocation2 [shape = 's32[1]{0}', space=sflag, size = 0x4, scoped, tag = 'scoped memory for tpu_custom_call.1']
  #allocation3 [shape = 'u8[512]{0}', space=smem, size = 0x200, scoped, tag = 'prefetched SMEM operand 0']
  %s0 = inlined_call_operand.hbm [shape: f32[2], index: 0, kind: input, shape index: {}]
  %s1 = inlined_call_operand.hbm [shape: f32[1,1024], index: 1, kind: input, shape index: {}]
  %s2 = inlined_call_operand.hbm [shape: f32[1,1024], index: 2, kind: output, shape index: {}]
  %s3 = sld [smem:[#allocation0]]
  $region18: #{tpu_custom_call.1} parent=0
    _
  %s5 = ssub.s32 1, %s3
  %s6 = scalar_select 0, %s5, %s3
  %s8 = sshll.u32 %s0, 4
  %s9 = int_to_ptr.hbm [resolvable:$true] %s8
  %11 = dma.hbm_to_smem %s9, 16, [#allocation3], [#allocation2]
  %13 = dma.done [#allocation2], 16
  %14 = sfence
  $region1: #{tpu_custom_call.1} parent=0
    #allocation4 [shape = 'u8[4096]{0}', space=vmem, size = 0x1000, scoped, tag = 'input window, operand 1, single buffered']
    #allocation5 [shape = 's32[1]{0}', space=sflag, size = 0x4, scoped, tag = 'scoped memory for tpu_custom_call.1']
    #allocation6 [shape = 's32[1]{0}', space=sflag, size = 0x4, scoped, tag = 'scoped memory for tpu_custom_call.1']
    #allocation7 [shape = 'u8[4096]{0}', space=vmem, size = 0x1000, scoped, tag = 'output window, operand 0, single buffered']
    %15 = vsyncpa [#allocation5], 0
    %16 = vsyncpa [#allocation6], 0
    // Predicated region
    $region2: #{tpu_custom_call.1} parent=1 // pred_check
      _
    $region3: #{tpu_custom_call.1} parent=1 // pred_check_branch
      %18 = sbr.rel (0) target = $region5
    $region4: #{tpu_custom_call.1} parent=1 // pred_region
      %20 = vsyncadd [#allocation5], 0
      %s22 = sshll.u32 %s1, 4
      %s23 = int_to_ptr.hbm [resolvable:$true] %s22
      %s24 = sshll.u32 [#allocation4], 4
      %s25 = int_to_ptr.vmem [resolvable:$true] %s24
      %27 = dma.hbm_to_vmem [thread:$0]  %s23, 128, %s25, [#allocation5]
    $region5: #{tpu_custom_call.1} parent=1 // pred_fallthru
      _
    // Predicated region
    $region6: #{tpu_custom_call.1} parent=1 // pred_check
      _
    $region7: #{tpu_custom_call.1} parent=1 // pred_check_branch
      %29 = sbr.rel (0) target = $region9
    $region8: #{tpu_custom_call.1} parent=1 // pred_region
      %31 = dma.done [#allocation5], 128
    $region9: #{tpu_custom_call.1} parent=1 // pred_fallthru
      _
    %s32 = sld [smem:[#allocation3]]
    %s33 = sld [smem:[#allocation3 + $0x1]]
    %v34 = vstv %s33
    %v35 = vrcp.pop %v34
    %v36 = vmul.f32 %v34, %v35
    %v37 = vsub.f32 1.0, %v36
    %v38 = vmul.f32 %v35, %v37
    %v39 = vadd.f32 %v35, %v38
    %vm40 = vweird.f32 %v34
    %vm41 = vweird.f32 %v35
    %vm42 = vmor %vm40, %vm41
    %v43 = vsel %vm42, %v35, %v39
    %v44 = vand.u32 2147483647, %v34
    %vm45 = vcmp.eq.f32.partialorder %v44, 8.507059e+37
    %v46 = vand.u32 %v34, 2147483648
    %v47 = vor.u32 1.1754944e-38, %v46
    %v48 = vsel %vm45, %v47, %v43
    %s49 = vtos %v48
    %v50 = vld [vmem:[#allocation4] sm:$0xff]
    %v51 = vstv %s32
    %v52 = vsub.f32 %v51, %v50
    %v53 = vstv %s49
    %v54 = vmul.f32 %v52, %v53
    %v55 = vxor.u32 %v54, 2147483648
    %v56 = vmul.f32 %v55, 1.442695
    %v57 = vpow.pop %v56
    %v58 = vadd.f32 %v57, 1.0
    %v59 = vrcp.pop %v58
    %v60 = vmul.f32 %v58, %v59
    %v61 = vsub.f32 1.0, %v60
    %v62 = vmul.f32 %v59, %v61
    %v63 = vadd.f32 %v59, %v62
    %vm64 = vweird.f32 %v58
    %vm65 = vweird.f32 %v59
    %vm66 = vmor %vm64, %vm65
    %v67 = vsel %vm66, %v59, %v63
    %v68 = vand.u32 2147483647, %v58
    %vm69 = vcmp.eq.f32.partialorder %v68, 8.507059e+37
    %v70 = vand.u32 %v58, 2147483648
    %v71 = vor.u32 1.1754944e-38, %v70
    %v72 = vsel %vm69, %v71, %v67
    %v73 = vmul.f32 1.0, %v72
    %74 = vst [vmem:[#allocation7] sm:$0xff] %v73
    // Predicated region
    $region10: #{tpu_custom_call.1} parent=1 // pred_check
      _
    $region11: #{tpu_custom_call.1} parent=1 // pred_check_branch
      %76 = sbr.rel (0) target = $region13
    $region12: #{tpu_custom_call.1} parent=1 // pred_region
      %78 = vsyncadd [#allocation6], 0
      %s80 = sshll.u32 [#allocation7], 4
      %s81 = int_to_ptr.vmem [resolvable:$true] %s80
      %s82 = sshll.u32 %s2, 4
      %s83 = int_to_ptr.hbm [resolvable:$true] %s82
      %85 = dma.vmem_to_hbm [thread:$0]  %s81, 128, %s83, [#allocation6]
    $region13: #{tpu_custom_call.1} parent=1 // pred_fallthru
      _
    // Predicated region
    $region14: #{tpu_custom_call.1} parent=1 // pred_check
      _
    $region15: #{tpu_custom_call.1} parent=1 // pred_check_branch
      %87 = sbr.rel (0) target = $region17
    $region16: #{tpu_custom_call.1} parent=1 // pred_region
      %89 = dma.done [#allocation6], 128
    $region17: #{tpu_custom_call.1} parent=1 // pred_fallthru
      _
    %90 = vsyncpa [#allocation5], 1
    %91 = vsyncpa [#allocation6], 1

</llo_original>
